<compile_context>
chip_gen: v5e
topology: v5e:2x2
jax: 0.10.0
libtpu: 0.0.40
codegen_flags: <defaults>
</compile_context>

<pallas_src>
import jax
import jax.numpy as jnp
from jax.experimental import pallas as pl
from jax.experimental.pallas import tpu as pltpu


def _round_up(x, m):
    return ((x + m - 1) // m) * m


def _time_embed_kernel(t_ref, vec_ref, w1_ref, w2_ref, o_ref):
    D = w1_ref.shape[0]
    H = w1_ref.shape[1]

    # Packed vector rows: 0 = freqs tiled twice [D], 1 = phase [D],
    #                     2 = bias1 [H],            3 = bias2 [H].
    freqs = vec_ref[0:1, 0:D]          # [1, D]
    phase = vec_ref[1:2, 0:D]          # [1, D]
    b1 = vec_ref[2:3, 0:H]             # [1, H]
    b2 = vec_ref[3:4, 0:H]             # [1, H]

    # Sinusoidal timestep embedding in a single EUP pass:
    # cos(x) = sin(x + pi/2)  ->  first D/2 lanes = cos, last D/2 = sin
    # (matches improved-diffusion's cat([cos, sin], -1) order).
    emb = jnp.sin(t_ref[...] * freqs + phase)                     # [TB, D] f32

    # MLP: Linear -> SiLU -> Linear.  bf16 MXU operands, f32 accumulation.
    h = jnp.dot(emb.astype(w1_ref.dtype), w1_ref[...],
                preferred_element_type=jnp.float32) + b1          # [TB, H] f32
    h = h * jax.nn.sigmoid(h)                                     # SiLU (f32)
    out = jnp.dot(h.astype(w2_ref.dtype), w2_ref[...],
                  preferred_element_type=jnp.float32) + b2        # [TB, H] f32
    o_ref[...] = out.astype(o_ref.dtype)


def make_eeg_time_embedding(freqs, w1, b1, w2, b2, *,
                            max_tile_b=1024,
                            min_rows_for_core_split=512,
                            out_dtype=jnp.float32):
    """Precompute packed vectors / bf16 weights once; return embed(t)->[B,H]."""
    half = freqs.shape[0]
    D = 2 * half
    H = w1.shape[1]
    assert w1.shape == (D, H) and w2.shape == (H, H)
    assert b1.shape == (H,) and b2.shape == (H,)
    # TODO(synk): improved-diffusion zero-pads if model_channels is odd; this
    # kernel assumes an even embedding dim D = 2*half.
    # If H is not a multiple of 128 the output store becomes masked vst.msk
    # (perf cliff, not a correctness bug) - prefer H % 128 == 0.

    # ---- one-time parameter prep (hoisted out of the per-call hot path) ----
    W = max(D, H)
    freqs_full = jnp.concatenate([freqs, freqs]).astype(jnp.float32)   # [D]
    phase = jnp.concatenate(
        [jnp.full((half,), jnp.pi / 2, jnp.float32),
         jnp.zeros((half,), jnp.float32)])                             # [D]
    vec = jnp.zeros((8, W), jnp.float32)
    vec = vec.at[0, :D].set(freqs_full)
    vec = vec.at[1, :D].set(phase)
    vec = vec.at[2, :H].set(b1.astype(jnp.float32))
    vec = vec.at[3, :H].set(b2.astype(jnp.float32))
    w1_b = jnp.asarray(w1, jnp.bfloat16)
    w2_b = jnp.asarray(w2, jnp.bfloat16)
    vec, w1_b, w2_b = jax.block_until_ready((vec, w1_b, w2_b))

    # Constant-index blocks never change across grid steps -> single buffer.
    resident = dict(pipeline_mode=pl.Buffered(1))

    @jax.jit
    def embed(t):
        B = t.shape[0]
        B8 = _round_up(max(B, 1), 8)

        # Grid sizing: minimize tail padding (balanced blocks) and, when the
        # batch is large enough to amortize ~0.35 us/step, use >= 2 steps so
        # both v7x TensorCores participate via "parallel" semantics.
        n_steps = pl.cdiv(B8, max_tile_b)
        if B8 >= min_rows_for_core_split:
            n_steps = max(n_steps, 2)
        TB = min(_round_up(pl.cdiv(B8, n_steps), 8), max_tile_b)
        n_steps = pl.cdiv(B8, TB)
        B_pad = n_steps * TB

        # Per-call work: just pad t into a [B_pad, 1] column.
        t_pad = jnp.zeros((B_pad, 1), jnp.float32).at[:B, 0].set(
            t.astype(jnp.float32))

        out = pl.pallas_call(
            _time_embed_kernel,
            out_shape=jax.ShapeDtypeStruct((B_pad, H), out_dtype),
            grid=(n_steps,),
            in_specs=[
                pl.BlockSpec((TB, 1), lambda i: (i, 0)),               # t tile
                pl.BlockSpec((8, W), lambda i: (0, 0), **resident),    # vectors
                pl.BlockSpec((D, H), lambda i: (0, 0), **resident),    # w1
                pl.BlockSpec((H, H), lambda i: (0, 0), **resident),    # w2
            ],
            out_specs=pl.BlockSpec((TB, H), lambda i: (i, 0)),
            compiler_params=pltpu.CompilerParams(
                dimension_semantics=("parallel",)),
        )(t_pad, vec, w1_b, w2_b)
        return out[:B]

    return embed


def eeg_time_embedding(t, freqs, w1, b1, w2, b2, **kwargs):
    """One-shot convenience wrapper (prefer make_eeg_time_embedding + reuse)."""
    return make_eeg_time_embedding(freqs, w1, b1, w2, b2, **kwargs)(t)


def reference_f32(t, freqs, w1, b1, w2, b2):
    """Pure-JAX f32 reference (standard improved-diffusion time embedding)."""
    args = t[:, None].astype(jnp.float32) * freqs[None, :]
    emb = jnp.concatenate([jnp.cos(args), jnp.sin(args)], axis=-1)
    h = emb @ w1 + b1
    h = h * jax.nn.sigmoid(h)
    return h @ w2 + b2


def reference_bf16(t, freqs, w1, b1, w2, b2):
    """Precision-matched reference (bf16 MXU operands, f32 accumulation)."""
    args = t[:, None].astype(jnp.float32) * freqs[None, :]
    emb = jnp.concatenate([jnp.cos(args), jnp.sin(args)], axis=-1)
    h = jnp.dot(emb.astype(jnp.bfloat16), w1.astype(jnp.bfloat16),
                preferred_element_type=jnp.float32) + b1
    h = h * jax.nn.sigmoid(h)
    return jnp.dot(h.astype(jnp.bfloat16), w2.astype(jnp.bfloat16),
                   preferred_element_type=jnp.float32) + b2


if __name__ == "__main__":
    B = 8          # batch of timesteps
    D = 32         # sinusoidal embedding dim (model_channels)
    H = 128        # time_embed_dim (lane-dense output)
    half = D // 2

    key = jax.random.PRNGKey(0)
    k_t, k_w1, k_b1, k_w2, k_b2 = jax.random.split(key, 5)

    # Deterministic synthetic inputs / parameters.
    t = jax.random.uniform(k_t, (B,), minval=0.0, maxval=1000.0,
                           dtype=jnp.float32)
    freqs = jnp.exp(-jnp.log(10000.0)
                    * jnp.arange(half, dtype=jnp.float32) / half)
    w1 = jax.random.normal(k_w1, (D, H), dtype=jnp.float32) * 0.02
    b1 = jax.random.normal(k_b1, (H,), dtype=jnp.float32) * 0.02
    w2 = jax.random.normal(k_w2, (H, H), dtype=jnp.float32) * 0.02
    b2 = jax.random.normal(k_b2, (H,), dtype=jnp.float32) * 0.02

    # Build once (hoisted param prep), call per-step with only t varying.
    embed = make_eeg_time_embedding(freqs, w1, b1, w2, b2)
    out = jax.block_until_ready(embed(t))
    assert out.shape == (B, H)

    ref_bf = reference_bf16(t, freqs, w1, b1, w2, b2)
    ref_fp = reference_f32(t, freqs, w1, b1, w2, b2)
    assert jnp.allclose(out, ref_bf, atol=5e-3, rtol=5e-3), \
        "mismatch vs precision-matched (bf16) reference"
    assert jnp.allclose(out, ref_fp, atol=3e-2, rtol=3e-2), \
        "mismatch vs f32 reference"

    print("KERNEL_OK")
</pallas_src>

<mosaic_0001>
module attributes {stable_mosaic.version = 11 : i64} {
  func.func @_time_embed_kernel(%arg0: i32, %arg1: memref<8x1xf32, #tpu.memory_space<vmem>>, %arg2: memref<8x128xf32, #tpu.memory_space<vmem>>, %arg3: memref<32x128xbf16, #tpu.memory_space<vmem>>, %arg4: memref<128x128xbf16, #tpu.memory_space<vmem>>, %arg5: memref<8x128xf32, #tpu.memory_space<vmem>>) attributes {dimension_semantics = [#tpu.dimension_semantics<parallel>], iteration_bounds = array<i64: 1>, scalar_prefetch = 0 : i64, scratch_operands = 0 : i64, tpu.core_type = #tpu.core_type<tc>, window_params = [{transform_indices = @transform_0, window_bounds = array<i64: 8, 1>}, {pipeline_mode = #tpu.pipeline_mode<synchronous>, transform_indices = @transform_1, window_bounds = array<i64: 8, 128>}, {pipeline_mode = #tpu.pipeline_mode<synchronous>, transform_indices = @transform_2, window_bounds = array<i64: 32, 128>}, {pipeline_mode = #tpu.pipeline_mode<synchronous>, transform_indices = @transform_3, window_bounds = array<i64: 128, 128>}, {transform_indices = @transform_4, window_bounds = array<i64: 8, 128>}]} {
    %c0 = arith.constant 0 : index
    %c0_0 = arith.constant 0 : index
    %0 = vector.load %arg2[%c0, %c0_0] : memref<8x128xf32, #tpu.memory_space<vmem>>, vector<1x32xf32>
    %c1 = arith.constant 1 : index
    %c0_1 = arith.constant 0 : index
    %1 = vector.load %arg2[%c1, %c0_1] : memref<8x128xf32, #tpu.memory_space<vmem>>, vector<1x32xf32>
    %c2 = arith.constant 2 : index
    %c0_2 = arith.constant 0 : index
    %2 = vector.load %arg2[%c2, %c0_2] : memref<8x128xf32, #tpu.memory_space<vmem>>, vector<1x128xf32>
    %c3 = arith.constant 3 : index
    %c0_3 = arith.constant 0 : index
    %3 = vector.load %arg2[%c3, %c0_3] : memref<8x128xf32, #tpu.memory_space<vmem>>, vector<1x128xf32>
    %c0_4 = arith.constant 0 : index
    %c0_5 = arith.constant 0 : index
    %4 = vector.load %arg1[%c0_4, %c0_5] : memref<8x1xf32, #tpu.memory_space<vmem>>, vector<8x1xf32>
    %5 = vector.broadcast %4 : vector<8x1xf32> to vector<8x32xf32>
    %6 = vector.broadcast %0 : vector<1x32xf32> to vector<8x32xf32>
    %7 = arith.mulf %5, %6 : vector<8x32xf32>
    %8 = vector.broadcast %1 : vector<1x32xf32> to vector<8x32xf32>
    %9 = arith.addf %7, %8 : vector<8x32xf32>
    %10 = math.sin %9 : vector<8x32xf32>
    %11 = arith.truncf %10 : vector<8x32xf32> to vector<8x32xbf16>
    %c0_6 = arith.constant 0 : index
    %c0_7 = arith.constant 0 : index
    %12 = vector.load %arg3[%c0_6, %c0_7] : memref<32x128xbf16, #tpu.memory_space<vmem>>, vector<32x128xbf16>
    %cst = arith.constant dense<0.000000e+00> : vector<8x128xf32>
    %13 = tpu.matmul %11, %12, %cst {dimension_numbers = #tpu.dot_dimension_numbers<[1], [0], [0], [1], [0, 0, 1, 1], [], []>} : vector<8x32xbf16>, vector<32x128xbf16>, vector<8x128xf32> -> vector<8x128xf32>
    %14 = vector.broadcast %2 : vector<1x128xf32> to vector<8x128xf32>
    %15 = arith.addf %13, %14 : vector<8x128xf32>
    %16 = arith.negf %15 : vector<8x128xf32>
    %17 = math.exp %16 : vector<8x128xf32>
    %cst_8 = arith.constant 1.000000e+00 : f32
    %18 = vector.broadcast %cst_8 : f32 to vector<8x128xf32>
    %19 = arith.addf %18, %17 : vector<8x128xf32>
    %20 = arith.divf %18, %19 : vector<8x128xf32>
    %21 = arith.mulf %15, %20 : vector<8x128xf32>
    %22 = arith.truncf %21 : vector<8x128xf32> to vector<8x128xbf16>
    %c0_9 = arith.constant 0 : index
    %c0_10 = arith.constant 0 : index
    %23 = vector.load %arg4[%c0_9, %c0_10] : memref<128x128xbf16, #tpu.memory_space<vmem>>, vector<128x128xbf16>
    %cst_11 = arith.constant dense<0.000000e+00> : vector<8x128xf32>
    %24 = tpu.matmul %22, %23, %cst_11 {dimension_numbers = #tpu.dot_dimension_numbers<[1], [0], [0], [1], [0, 0, 1, 1], [], []>} : vector<8x128xbf16>, vector<128x128xbf16>, vector<8x128xf32> -> vector<8x128xf32>
    %25 = vector.broadcast %3 : vector<1x128xf32> to vector<8x128xf32>
    %26 = arith.addf %24, %25 : vector<8x128xf32>
    %c0_12 = arith.constant 0 : index
    %c0_13 = arith.constant 0 : index
    %27 = vector.load %arg5[%c0_12, %c0_13] : memref<8x128xf32, #tpu.memory_space<vmem>>, vector<8x128xf32>
    tpu.vector_store %arg5[%c0_12, %c0_13], %26 {strides = array<i32>} : memref<8x128xf32, #tpu.memory_space<vmem>>, vector<8x128xf32>,
    return
  }
  func.func @transform_0(%arg0: i32) -> (i32, i32) {
    %c0_i32 = arith.constant 0 : i32
    %c0_i32_0 = arith.constant 0 : i32
    return %arg0, %c0_i32 : i32, i32
  }
  func.func @transform_1(%arg0: i32) -> (i32, i32) {
    %c0_i32 = arith.constant 0 : i32
    %c0_i32_0 = arith.constant 0 : i32
    %c0_i32_1 = arith.constant 0 : i32
    return %c0_i32, %c0_i32_0 : i32, i32
  }
  func.func @transform_2(%arg0: i32) -> (i32, i32) {
    %c0_i32 = arith.constant 0 : i32
    %c0_i32_0 = arith.constant 0 : i32
    %c0_i32_1 = arith.constant 0 : i32
    return %c0_i32, %c0_i32_0 : i32, i32
  }
  func.func @transform_3(%arg0: i32) -> (i32, i32) {
    %c0_i32 = arith.constant 0 : i32
    %c0_i32_0 = arith.constant 0 : i32
    %c0_i32_1 = arith.constant 0 : i32
    return %c0_i32, %c0_i32_0 : i32, i32
  }
  func.func @transform_4(%arg0: i32) -> (i32, i32) {
    %c0_i32 = arith.constant 0 : i32
    %c0_i32_0 = arith.constant 0 : i32
    return %arg0, %c0_i32 : i32, i32
  }
}

</mosaic_0001>

<llo_original>
// kernel: embed.1
$region0: #{embed.1}
  #allocation0 [shape = 'u32[]', space=smem, size = 0x4, offset = 0x4, fixed_abs, tag = 'smem constant byte address 0x4 - core index']
  #allocation1 [shape = 'u32[72,128]{1,0:T(1,128)}', space=vmem, size = 0x9000, scoped, tag = 'internal scratch']
  %s0 = inlined_call_operand.vmem [shape: f32[8,1], index: 0, kind: input, shape index: {}]
  %s1 = inlined_call_operand.vmem [shape: f32[8,128], index: 1, kind: input, shape index: {}]
  %s2 = inlined_call_operand.hbm [shape: bf16[32,128], index: 2, kind: input, shape index: {}]
  %s3 = inlined_call_operand.hbm [shape: bf16[128,128], index: 3, kind: input, shape index: {}]
  %s4 = inlined_call_operand.hbm [shape: f32[8,128], index: 4, kind: output, shape index: {}]
  %s5 = sld [smem:[#allocation0]]
  $region34: #{embed.1} parent=0
    _
  %s7 = ssub.s32 1, %s5
  %s8 = scalar_select 0, %s7, %s5
  $region1: #{embed.1} parent=0
    #allocation2 [shape = 'u8[8192]{0}', space=vmem, size = 0x2000, scoped, tag = 'input window, operand 2, single buffered']
    #allocation3 [shape = 's32[1]{0}', space=sflag, size = 0x4, scoped, tag = 'scoped memory for embed.1']
    #allocation4 [shape = 's32[1]{0}', space=sflag, size = 0x4, scoped, tag = 'scoped memory for embed.1']
    #allocation5 [shape = 'u8[32768]{0}', space=vmem, size = 0x8000, scoped, tag = 'input window, operand 3, single buffered']
    #allocation6 [shape = 's32[1]{0}', space=sflag, size = 0x4, scoped, tag = 'scoped memory for embed.1']
    #allocation7 [shape = 'u8[4096]{0}', space=vmem, size = 0x1000, scoped, tag = 'output window, operand 0, single buffered']
    %9 = vsyncpa [#allocation3], 0
    %10 = vsyncpa [#allocation6], 0
    %11 = vsyncpa [#allocation4], 0
    // Predicated region
    $region2: #{embed.1} parent=1 // pred_check
      _
    $region3: #{embed.1} parent=1 // pred_check_branch
      %13 = sbr.rel (0) target = $region5
    $region4: #{embed.1} parent=1 // pred_region
      _
    $region5: #{embed.1} parent=1 // pred_fallthru
      _
    // Predicated region
    $region6: #{embed.1} parent=1 // pred_check
      _
    $region7: #{embed.1} parent=1 // pred_check_branch
      %15 = sbr.rel (0) target = $region9
    $region8: #{embed.1} parent=1 // pred_region
      _
    $region9: #{embed.1} parent=1 // pred_fallthru
      _
    // Predicated region
    $region10: #{embed.1} parent=1 // pred_check
      _
    $region11: #{embed.1} parent=1 // pred_check_branch
      %17 = sbr.rel (0) target = $region13
    $region12: #{embed.1} parent=1 // pred_region
      %19 = vsyncadd [#allocation3], 0
      %s20 = sshll.u32 %s2, 4
      %s21 = int_to_ptr.hbm [resolvable:$true] %s20
      %s22 = sshll.u32 [#allocation2], 4
      %s23 = int_to_ptr.vmem [resolvable:$true] %s22
      %28 = dma.hbm_to_vmem [thread:$0]  %s21, 256, %s23, [#allocation3], 64, 64, 4
    $region13: #{embed.1} parent=1 // pred_fallthru
      _
    // Predicated region
    $region14: #{embed.1} parent=1 // pred_check
      _
    $region15: #{embed.1} parent=1 // pred_check_branch
      %30 = sbr.rel (0) target = $region17
    $region16: #{embed.1} parent=1 // pred_region
      %32 = vsyncadd [#allocation6], 0
      %s33 = sshll.u32 %s3, 4
      %s34 = int_to_ptr.hbm [resolvable:$true] %s33
      %s35 = sshll.u32 [#allocation5], 4
      %s36 = int_to_ptr.vmem [resolvable:$true] %s35
      %41 = dma.hbm_to_vmem [thread:$0]  %s34, 1024, %s36, [#allocation6], 64, 64, 4
    $region17: #{embed.1} parent=1 // pred_fallthru
      _
    // Predicated region
    $region18: #{embed.1} parent=1 // pred_check
      _
    $region19: #{embed.1} parent=1 // pred_check_branch
      %43 = sbr.rel (0) target = $region21
    $region20: #{embed.1} parent=1 // pred_region
      %45 = dma.done [#allocation3], 256
    $region21: #{embed.1} parent=1 // pred_fallthru
      _
    // Predicated region
    $region22: #{embed.1} parent=1 // pred_check
      _
    $region23: #{embed.1} parent=1 // pred_check_branch
      %47 = sbr.rel (0) target = $region25
    $region24: #{embed.1} parent=1 // pred_region
      %49 = dma.done [#allocation6], 1024
    $region25: #{embed.1} parent=1 // pred_fallthru
      _
    %v51 = vld [vmem:[%s1] sm:$0x1]
    %v52 = vld [vmem:[%s1 + $0x1] sm:$0x1]
    %v53 = vld [vmem:[%s1 + $0x2] sm:$0x1]
    %v54 = vld [vmem:[%s1 + $0x3] sm:$0x1]
    %v55 = vld [vmem:[%s0] sm:$0xff]
    %57 = vset.pattern.permute.xlu0 0
    %58 = vperm.xlu0 %57, %v55
    %v59 = vpop.permute.xlu0 %58
    %v61 = vperm.slane %v51, 0
    %v62 = vmul.f32 %v59, %v61
    %v63 = vperm.slane %v52, 0
    %v64 = vadd.f32 %v62, %v63
    %v65 = vand.u32 2147483647, %v64
    %vm66 = vcmp.le.f32.partialorder %v65, 0.7853982
    %vm67 = vcmp.lt.s32.totalorder %v64, 0
    %v68 = vand.u32 %v64, 2139095040
    %v69 = vshrl.u32 %v68, 23
    %v70 = vsub.s32 %v69, 127
    %v71 = vand.u32 2147483647, %v64
    %v72 = vand.u32 %v71, 8388607
    %v73 = vor.u32 %v72, 8388608
    %v74 = vsub.s32 0, %v73
    %v75 = vadd.s32 %v70, 1
    %vm76 = vcmp.gt.s32.totalorder %v75, 0
    %v77 = vsel %vm76, %v75, 0
    %v78 = vshrl.u32 %v77, 5
    %v79 = vand.u32 %v77, 31
    %v80 = vsub.s32 32, %v79
    %v81 = vshrl.u32 683565275, %v80
    %v82 = vshll.u32 683565275, %v79
    %v83 = vshrl.u32 2475754826, %v80
    %v84 = vor.u32 %v82, %v83
    %v85 = vshll.u32 2475754826, %v79
    %v86 = vshrl.u32 2131351028, %v80
    %v87 = vor.u32 %v85, %v86
    %v88 = vshll.u32 2131351028, %v79
    %v89 = vshrl.u32 2102212464, %v80
    %v90 = vor.u32 %v88, %v89
    %v91 = vshll.u32 2102212464, %v79
    %v92 = vshrl.u32 920167782, %v80
    %v93 = vor.u32 %v91, %v92
    %v94 = vshll.u32 920167782, %v79
    %v95 = vshrl.u32 1326507024, %v80
    %v96 = vor.u32 %v94, %v95
    %vm97 = vcmp.lt.s32.totalorder %v78, 1
    %vm98 = vcmp.lt.s32.totalorder %v78, 2
    %vm99 = vcmp.lt.s32.totalorder %v78, 3
    %vm100 = vcmp.lt.s32.totalorder %v78, 4
    %v101 = vsel %vm97, %v81, %v84
    %v102 = vsel %vm100, %v90, 2102212464
    %v103 = vsel %vm99, %v87, %v102
    %v104 = vsel %vm98, %v101, %v103
    %v105 = vsel %vm97, %v84, %v87
    %v106 = vsel %vm100, %v93, 920167782
    %v107 = vsel %vm99, %v90, %v106
    %v108 = vsel %vm98, %v105, %v107
    %v109 = vsel %vm97, %v87, %v90
    %v110 = vsel %vm100, %v96, 1326507024
    %v111 = vsel %vm99, %v93, %v110
    %v112 = vsel %vm98, %v109, %v111
    %v113 = vshll.u32 %v73, 8
    %v114 = vand.u32 %v113, 65535
    %v115 = vshrl.u32 %v113, 16
    %v116 = vand.u32 %v112, 65535
    %v117 = vshrl.u32 %v112, 16
    %v118 = vmul.u32 %v114, %v116
    %v119 = vmul.u32 %v114, %v117
    %v120 = vmul.u32 %v115, %v116
    %v121 = vmul.u32 %v115, %v117
    %v122 = vshll.u32 %v119, 16
    %v123 = vshrl.u32 %v119, 16
    %v124 = vshll.u32 %v120, 16
    %v125 = vshrl.u32 %v120, 16
    %vm126 = vc.u32 %v118, %v122
    %v127 = vsel %vm126, 1, 0
    %v128 = vadd.s32 %v118, %v122
    %v129 = vadd.s32 %v121, %v127
    %vm130 = vc.u32 %v128, %v124
    %v131 = vsel %vm130, 1, 0
    %v132 = vadd.s32 %v128, %v124
    %v133 = vadd.s32 %v129, %v131
    %v134 = vadd.s32 %v133, %v123
    %v135 = vadd.s32 %v134, %v125
    %v136 = vand.u32 %v113, 65535
    %v137 = vshrl.u32 %v113, 16
    %v138 = vand.u32 %v108, 65535
    %v139 = vshrl.u32 %v108, 16
    %v140 = vmul.u32 %v136, %v138
    %v141 = vmul.u32 %v136, %v139
    %v142 = vmul.u32 %v137, %v138
    %v143 = vmul.u32 %v137, %v139
    %v144 = vshll.u32 %v141, 16
    %v145 = vshrl.u32 %v141, 16
    %v146 = vshll.u32 %v142, 16
    %v147 = vshrl.u32 %v142, 16
    %vm148 = vc.u32 %v140, %v144
    %v149 = vsel %vm148, 1, 0
    %v150 = vadd.s32 %v140, %v144
    %v151 = vadd.s32 %v143, %v149
    %vm152 = vc.u32 %v150, %v146
    %v153 = vsel %vm152, 1, 0
    %v154 = vadd.s32 %v150, %v146
    %v155 = vadd.s32 %v151, %v153
    %v156 = vadd.s32 %v155, %v145
    %v157 = vadd.s32 %v156, %v147
    %v158 = vmul.u32 %v113, %v104
    %v159 = vadd.s32 %v135, %v154
    %vm160 = vc.u32 %v135, %v154
    %v161 = vadd.s32 %v157, 1
    %v162 = vsel %vm160, %v161, %v157
    %v163 = vadd.s32 %v158, %v162
    %v164 = vadd.s32 %v163, 536870912
    %v165 = vshrl.u32 %v164, 30
    %v166 = vshll.u32 %v165, 30
    %v167 = vsub.s32 %v163, %v166
    %vm168 = vcmp.lt.s32.totalorder %v167, 0
    %v169 = vsub.s32 0, %v167
    %v170 = vsel %vm168, %v169, %v167
    %v171 = vclz %v170
    %v172 = vsub.s32 %v171, 2
    %vm173 = vcmp.gt.s32.totalorder 0, %v172
    %v174 = vsel %vm173, 0, %v172
    %v175 = vsub.s32 32, %v174
    %v176 = vshll.u32 %v167, %v174
    %v177 = vshrl.u32 %v159, %v175
    %v178 = vor.u32 %v176, %v177
    %v179 = vsub.s32 4294967266, %v174
    %v180 = vadd.s32 %v179, 127
    %v181 = vshll.u32 %v180, 23
    %v182 = vor.u32 4788187, %v181
    %v183 = vand.u32 2147483647, %v182
    %v185 = vcvt.s32.f32 %v178
    %v186 = vmul.f32 %v185, %v183
    %v187 = vxor.u32 %v186, 2147483648
    %v188 = vsel %vm67, %v187, %v186
    %v189 = vsub.s32 4, %v165
    %v190 = vsel %vm67, %v189, %v165
    %v191 = vsel %vm66, %v64, %v188
    %v192 = vsel %vm66, 0, %v190
    %v193 = vmul.f32 %v191, %v191
    %v194 = vmul.f32 %v193, -0.001358992
    %v195 = vadd.f32 %v194, 0.041655596
    %v196 = vmul.f32 %v193, %v195
    %v197 = vadd.f32 %v196, -0.4999988
    %v198 = vmul.f32 %v193, %v197
    %v199 = vadd.f32 1.0, %v198
    %v200 = vmul.f32 %v191, %v191
    %v201 = vmul.f32 %v200, -0.00019511016
    %v202 = vadd.f32 %v201, 0.008332121
    %v203 = vmul.f32 %v200, %v202
    %v204 = vadd.f32 %v203, -0.16666654
    %v205 = vmul.f32 %v200, %v204
    %v206 = vadd.f32 %v205, 1.0
    %v207 = vmul.f32 %v206, %v191
    %vm208 = vweird.f32 %v64
    %v209 = vadd.s32 %v192, 3
    %v210 = vand.u32 %v209, 3
    %vm211 = vcmp.lt.s32.totalorder %v210, 2
    %vm212 = vcmp.eq.s32.totalorder %v210, 0
    %v213 = vxor.u32 %v207, 2147483648
    %v214 = vsel %vm212, %v199, %v213
    %vm215 = vcmp.eq.s32.totalorder %v210, 2
    %v216 = vxor.u32 %v199, 2147483648
    %v217 = vsel %vm215, %v216, %v207
    %v218 = vsel %vm211, %v214, %v217
    %v219 = vsel %vm208, nan, %v218
    %v220 = vpack.c.bf16 %v219, %v219
    %v221 = vld [vmem:[#allocation2] sm:$0xf]
    %v222 = vld [vmem:[#allocation2 + $0x4] sm:$0xf]
    %v223 = vld [vmem:[#allocation2 + $0x8] sm:$0xf]
    %v224 = vld [vmem:[#allocation2 + $0xc] sm:$0xf]
    %v225 = vperm.slane %v53, 0
    %v230 = vunpack.c.l.b16 %v221
    %v231 = vunpack.c.l.b16 %v222
    %v232 = vunpack.c.l.b16 %v223
    %v233 = vunpack.c.l.b16 %v224
    %v234 = vpack.c.b16 %v231, %v230
    %v235 = vpack.c.b16 %v233, %v232
    %vm238 = vcmask 261120
    %v240 = vsel %vm238, %v220, 0
    %242 = vmatpush.bf16.msra.mxu0 0
    %243 = vmatpush.bf16.msra.mxu0 0
    %244 = vmatpush.bf16.msra.mxu0 0
    %245 = vmatpush.bf16.msra.mxu0 0
    %246 = vmatpush.bf16.msra.mxu0 0
    %247 = vmatpush.bf16.msra.mxu0 0
    %248 = vmatpush.bf16.msra.mxu0 %v235
    %249 = vmatpush.bf16.msra.mxu0 %v234
    %250 = vmatmul.bf16.gmra.mxu0 %v240
    %v251 = vpop.f32.mrf.mxu0
    %v252 = vadd.f32 %v225, %v251
    %v253 = vpop.f32.mrf.mxu0
    %254 = vdwg.mxu0
    %v255 = vxor.u32 %v252, 2147483648
    %v256 = vmul.f32 %v255, 1.442695
    %v257 = vpow.pop %v256
    %v258 = vadd.f32 %v257, 1.0
    %v259 = vrcp.pop %v258
    %v260 = vmul.f32 %v258, %v259
    %v261 = vsub.f32 1.0, %v260
    %v262 = vmul.f32 %v259, %v261
    %v263 = vadd.f32 %v259, %v262
    %vm264 = vweird.f32 %v258
    %vm265 = vweird.f32 %v259
    %vm266 = vmor %vm264, %vm265
    %v267 = vsel %vm266, %v259, %v263
    %v268 = vand.u32 2147483647, %v258
    %vm269 = vcmp.eq.f32.partialorder %v268, 8.507059e+37
    %v270 = vand.u32 %v258, 2147483648
    %v271 = vor.u32 1.1754944e-38, %v270
    %v272 = vsel %vm269, %v271, %v267
    %v273 = vmul.f32 1.0, %v272
    %v274 = vmul.f32 %v252, %v273
    %v275 = vpack.c.bf16 %v274, %v274
    %v276 = vld [vmem:[#allocation5] sm:$0xf]
    %v277 = vld [vmem:[#allocation5 + $0x4] sm:$0xf]
    %v278 = vld [vmem:[#allocation5 + $0x8] sm:$0xf]
    %v279 = vld [vmem:[#allocation5 + $0xc] sm:$0xf]
    %v280 = vld [vmem:[#allocation5 + $0x10] sm:$0xf]
    %v281 = vld [vmem:[#allocation5 + $0x14] sm:$0xf]
    %v282 = vld [vmem:[#allocation5 + $0x18] sm:$0xf]
    %v283 = vld [vmem:[#allocation5 + $0x1c] sm:$0xf]
    %v284 = vld [vmem:[#allocation5 + $0x20] sm:$0xf]
    %v285 = vld [vmem:[#allocation5 + $0x24] sm:$0xf]
    %v286 = vld [vmem:[#allocation5 + $0x28] sm:$0xf]
    %v287 = vld [vmem:[#allocation5 + $0x2c] sm:$0xf]
    %v288 = vld [vmem:[#allocation5 + $0x30] sm:$0xf]
    %v289 = vld [vmem:[#allocation5 + $0x34] sm:$0xf]
    %v290 = vld [vmem:[#allocation5 + $0x38] sm:$0xf]
    %v291 = vld [vmem:[#allocation5 + $0x3c] sm:$0xf]
    %v292 = vperm.slane %v54, 0
    %v309 = vunpack.c.l.b16 %v276
    %v310 = vunpack.c.l.b16 %v277
    %v311 = vunpack.c.l.b16 %v278
    %v312 = vunpack.c.l.b16 %v279
    %v313 = vunpack.c.l.b16 %v280
    %v314 = vunpack.c.l.b16 %v281
    %v315 = vunpack.c.l.b16 %v282
    %v316 = vunpack.c.l.b16 %v283
    %v317 = vunpack.c.l.b16 %v284
    %v318 = vunpack.c.l.b16 %v285
    %v319 = vunpack.c.l.b16 %v286
    %v320 = vunpack.c.l.b16 %v287
    %v321 = vunpack.c.l.b16 %v288
    %v322 = vunpack.c.l.b16 %v289
    %v323 = vunpack.c.l.b16 %v290
    %v324 = vunpack.c.l.b16 %v291
    %v325 = vpack.c.b16 %v310, %v309
    %v326 = vpack.c.b16 %v312, %v311
    %v327 = vpack.c.b16 %v314, %v313
    %v328 = vpack.c.b16 %v316, %v315
    %v329 = vpack.c.b16 %v318, %v317
    %v330 = vpack.c.b16 %v320, %v319
    %v331 = vpack.c.b16 %v322, %v321
    %v332 = vpack.c.b16 %v324, %v323
    %341 = vmatpush.bf16.msra.mxu0 %v332
    %342 = vmatpush.bf16.msra.mxu0 %v331
    %343 = vmatpush.bf16.msra.mxu0 %v330
    %344 = vmatpush.bf16.msra.mxu0 %v329
    %345 = vmatpush.bf16.msra.mxu0 %v328
    %346 = vmatpush.bf16.msra.mxu0 %v327
    %347 = vmatpush.bf16.msra.mxu0 %v326
    %348 = vmatpush.bf16.msra.mxu0 %v325
    %349 = vmatmul.bf16.gmra.mxu0 %v275
    %v350 = vpop.f32.mrf.mxu0
    %v351 = vadd.f32 %v292, %v350
    %v352 = vpop.f32.mrf.mxu0
    %353 = vdwg.mxu0
    %354 = vst [vmem:[#allocation7] sm:$0xff] %v351
    // Predicated region
    $region26: #{embed.1} parent=1 // pred_check
      _
    $region27: #{embed.1} parent=1 // pred_check_branch
      %356 = sbr.rel (0) target = $region29
    $region28: #{embed.1} parent=1 // pred_region
      %358 = vsyncadd [#allocation4], 0
      %s360 = sshll.u32 [#allocation7], 4
      %s361 = int_to_ptr.vmem [resolvable:$true] %s360
      %s362 = sshll.u32 %s4, 4
      %s363 = int_to_ptr.hbm [resolvable:$true] %s362
      %365 = dma.vmem_to_hbm [thread:$0]  %s361, 128, %s363, [#allocation4]
    $region29: #{embed.1} parent=1 // pred_fallthru
      _
    // Predicated region
    $region30: #{embed.1} parent=1 // pred_check
      _
    $region31: #{embed.1} parent=1 // pred_check_branch
      %367 = sbr.rel (0) target = $region33
    $region32: #{embed.1} parent=1 // pred_region
      %369 = dma.done [#allocation4], 128
    $region33: #{embed.1} parent=1 // pred_fallthru
      _
    %370 = vsyncpa [#allocation3], 1
    %371 = vsyncpa [#allocation6], 1
    %372 = vsyncpa [#allocation4], 1

</llo_original>
